<compile_context>
chip_gen: v7x
topology: tpu7x:2x2x1
jax: 0.10.0
libtpu: 0.0.40
codegen_flags: <defaults>
</compile_context>

<pallas_src>
from functools import partial

import jax
import jax.numpy as jnp
from jax.experimental import pallas as pl
from jax.experimental.pallas import tpu as pltpu


def dcn_kernel(x_ref, cw_ref, cb_ref, w1t_ref, b1_ref, w2t_ref, b2_ref,
               wfc_ref, wfd_ref, bf_ref, out_ref, *, layer_num):
    """Fused cross-network + deep DNN + final linear/sigmoid (feature-major).

    x_ref   : (D, TB)   transposed [sparse_embeds, dense] input tile
    cw_ref  : (D, L)    cross weights (torch (D,1) per layer, columns)
    cb_ref  : (D, L)    cross biases
    w1t_ref : (H1, D),  b1_ref: (H1, 1)   deep layer 1 (transposed)
    w2t_ref : (H2, H1), b2_ref: (H2, 1)   deep layer 2 (transposed)
    wfc_ref : (D, 1)    final-linear weights acting on the cross branch
    wfd_ref : (H2, 1)   final-linear weights acting on the deep branch
    bf_ref  : (1, 1)    final-linear bias
    out_ref : (1, TB)   sigmoid(logit), batch on lanes (lane-dense store)
    """
    x0 = x_ref[...]                                       # (D, TB) f32

    # ---- CrossNetwork ----------------------------------------------------
    # torch:  x_{i+1} = bmm(x_0, x_i^T) @ w_i + b_i + x_i
    # by associativity == x_0 * (w_i . x_i) + b_i + x_i   (no BxDxD outer prod)
    # Sublane reduce (XLU) + elementwise (VPU); deliberately NOT an MXU matmul.
    xc = x0
    for i in range(layer_num):                            # static unroll, L small
        w = cw_ref[:, i:i + 1]                            # (D, 1)
        b = cb_ref[:, i:i + 1]                            # (D, 1)
        xw = jnp.sum(xc * w, axis=0, keepdims=True)       # (1, TB)
        xc = x0 * xw + b + xc                             # (D, TB)

    # ---- Deep DNN (Linear -> ReLU per layer; dropout is identity in eval) --
    h = jnp.dot(w1t_ref[...], x0, preferred_element_type=jnp.float32) + b1_ref[...]
    h = jnp.maximum(h, 0.0)                               # (H1, TB)
    h = jnp.dot(w2t_ref[...], h, preferred_element_type=jnp.float32) + b2_ref[...]
    h = jnp.maximum(h, 0.0)                               # (H2, TB)
    # TODO(synk): dropout omitted (inference / eval semantics -> identity).

    # ---- concat([cross, deep]) @ W_final + b, sigmoid ----------------------
    # nn.Linear(D+H2, 1) weight row split into cross / deep parts; avoids an
    # in-kernel concat and keeps the reductions on the XLU.
    logit = (jnp.sum(xc * wfc_ref[...], axis=0, keepdims=True)
             + jnp.sum(h * wfd_ref[...], axis=0, keepdims=True)
             + bf_ref[...])                               # (1, TB)
    out_ref[...] = jax.nn.sigmoid(logit)


def _round_up(a, m):
    return (a + m - 1) // m * m


def dcn_forward(dense_input, sparse_input, params, *, layer_num, max_tb=512):
    # --- embedding lookups + feature concat (glue, plain JAX) --------------
    embeds = [jnp.take(params["embed"][i], sparse_input[:, i], axis=0)
              for i in range(sparse_input.shape[1])]
    all_input = jnp.concatenate(embeds + [dense_input], axis=1)
    all_input = all_input.astype(jnp.float32)
    B, D = all_input.shape

    # Batch tile: multiple of 128 (lane width), capped at max_tb.
    TB = min(max_tb, _round_up(B, 128))
    B_pad = _round_up(B, TB)

    # Feature-major layout: (D, B_pad), batch on the lane axis, zero-padded.
    x_t = jnp.transpose(all_input)
    x_t = jnp.pad(x_t, ((0, 0), (0, B_pad - B)))

    # Transpose parameters once in the wrapper (layout plumbing).
    cw_t = jnp.transpose(params["cross_w"])               # (D, L)
    cb_t = jnp.transpose(params["cross_b"])               # (D, L)
    w1_t = jnp.transpose(params["w1"])                    # (H1, D)
    b1_c = jnp.transpose(params["b1"])                    # (H1, 1)
    w2_t = jnp.transpose(params["w2"])                    # (H2, H1)
    b2_c = jnp.transpose(params["b2"])                    # (H2, 1)
    wfc_c = jnp.transpose(params["wf_cross"])             # (D, 1)
    wfd_c = jnp.transpose(params["wf_deep"])              # (H2, 1)
    bf = params["bf"]                                     # (1, 1)

    L = cw_t.shape[1]
    H1 = w1_t.shape[0]
    H2 = w2_t.shape[0]

    # Tiled x / output over a 1-D batch grid; parameters use constant block
    # indices so they are DMA'd once and stay resident across grid steps.
    x_spec = pl.BlockSpec((D, TB), lambda i: (0, i))
    out_spec = pl.BlockSpec((1, TB), lambda i: (0, i))

    def const_spec(shape):
        return pl.BlockSpec(shape, lambda i: (0, 0))

    kernel = partial(dcn_kernel, layer_num=layer_num)
    out = pl.pallas_call(
        kernel,
        out_shape=jax.ShapeDtypeStruct((1, B_pad), jnp.float32),
        grid=(B_pad // TB,),
        in_specs=[x_spec,
                  const_spec((D, L)), const_spec((D, L)),
                  const_spec((H1, D)), const_spec((H1, 1)),
                  const_spec((H2, H1)), const_spec((H2, 1)),
                  const_spec((D, 1)), const_spec((H2, 1)),
                  const_spec((1, 1))],
        out_specs=out_spec,
        compiler_params=pltpu.CompilerParams(
            dimension_semantics=("parallel",)),
    )(x_t, cw_t, cb_t, w1_t, b1_c, w2_t, b2_c, wfc_c, wfd_c, bf)

    return out[0, :B]                                     # matches torch .squeeze()


def dcn_reference(dense_input, sparse_input, params, *, layer_num):
    """Pure-JAX reference mirroring the PyTorch forward exactly."""
    embeds = [jnp.take(params["embed"][i], sparse_input[:, i], axis=0)
              for i in range(sparse_input.shape[1])]
    x = jnp.concatenate(embeds + [dense_input], axis=1).astype(jnp.float32)
    x0 = x[:, :, None]                                    # (B, D, 1)
    xc = x0
    xt = jnp.transpose(x0, (0, 2, 1))                     # (B, 1, D)
    for i in range(layer_num):
        w = params["cross_w"][i][:, None]                 # (D, 1)
        b = params["cross_b"][i][:, None]                 # (D, 1)
        xc = jnp.matmul(jnp.matmul(x0, xt), w) + b + xc
        xt = jnp.transpose(xc, (0, 2, 1))
    cross_out = xc[:, :, 0]                               # (B, D)
    h = jnp.maximum(x @ params["w1"] + params["b1"], 0.0)
    h = jnp.maximum(h @ params["w2"] + params["b2"], 0.0)
    logit = (jnp.sum(cross_out * params["wf_cross"], axis=1, keepdims=True)
             + jnp.sum(h * params["wf_deep"], axis=1, keepdims=True)
             + params["bf"])
    return jax.nn.sigmoid(logit).squeeze(-1)


if __name__ == "__main__":
    key = jax.random.PRNGKey(0)

    # Small, module-consistent shapes.
    B = 8                      # batch
    n_dense = 4                # len(dense_feat_columns)
    n_sparse = 3               # len(sparse_feat_columns)
    feat_nums = [10, 12, 8]    # vocab sizes of the sparse features
    embed_dim = 8
    layer_num = 2
    H1, H2 = 32, 16            # hidden_units (before the input_dim insert)
    D = n_dense + n_sparse * embed_dim   # hidden_units[0] after insert = 28

    ks = list(jax.random.split(key, 16))

    params = {
        "embed": [jax.random.normal(ks[i], (feat_nums[i], embed_dim), jnp.float32)
                  for i in range(n_sparse)],
        "cross_w": jax.random.normal(ks[3], (layer_num, D), jnp.float32),
        "cross_b": jax.random.normal(ks[4], (layer_num, D), jnp.float32),
        "w1": jax.random.normal(ks[5], (D, H1), jnp.float32) * 0.1,
        "b1": jax.random.normal(ks[6], (1, H1), jnp.float32) * 0.1,
        "w2": jax.random.normal(ks[7], (H1, H2), jnp.float32) * 0.1,
        "b2": jax.random.normal(ks[8], (1, H2), jnp.float32) * 0.1,
        "wf_cross": jax.random.normal(ks[9], (1, D), jnp.float32) * 0.1,
        "wf_deep": jax.random.normal(ks[10], (1, H2), jnp.float32) * 0.1,
        "bf": jax.random.normal(ks[11], (1, 1), jnp.float32) * 0.1,
    }

    dense_input = jax.random.normal(ks[12], (B, n_dense), jnp.float32)
    sparse_input = jnp.stack(
        [jax.random.randint(ks[13 + 0], (B,), 0, feat_nums[0]),
         jax.random.randint(ks[13 + 1], (B,), 0, feat_nums[1]),
         jax.random.randint(ks[13 + 2], (B,), 0, feat_nums[2])],
        axis=1).astype(jnp.int32)

    out = dcn_forward(dense_input, sparse_input, params, layer_num=layer_num)
    out = jax.block_until_ready(out)

    ref = dcn_reference(dense_input, sparse_input, params, layer_num=layer_num)
    assert out.shape == (B,)
    assert jnp.allclose(out, ref, atol=1e-5, rtol=1e-5), (out, ref)

    print("KERNEL_OK")
</pallas_src>

<mosaic_0001>
module attributes {stable_mosaic.version = 11 : i64} {
  func.func @dcn_kernel(%arg0: i32, %arg1: memref<28x128xf32, #tpu.memory_space<vmem>>, %arg2: memref<28x2xf32, #tpu.memory_space<vmem>>, %arg3: memref<28x2xf32, #tpu.memory_space<vmem>>, %arg4: memref<32x28xf32, #tpu.memory_space<vmem>>, %arg5: memref<32x1xf32, #tpu.memory_space<vmem>>, %arg6: memref<16x32xf32, #tpu.memory_space<vmem>>, %arg7: memref<16x1xf32, #tpu.memory_space<vmem>>, %arg8: memref<28x1xf32, #tpu.memory_space<vmem>>, %arg9: memref<16x1xf32, #tpu.memory_space<vmem>>, %arg10: memref<1x1xf32, #tpu.memory_space<vmem>>, %arg11: memref<1x128xf32, #tpu.memory_space<vmem>>) attributes {dimension_semantics = [#tpu.dimension_semantics<parallel>], iteration_bounds = array<i64: 1>, scalar_prefetch = 0 : i64, scratch_operands = 0 : i64, tpu.core_type = #tpu.core_type<tc>, window_params = [{transform_indices = @transform_0, window_bounds = array<i64: 28, 128>}, {pipeline_mode = #tpu.pipeline_mode<synchronous>, transform_indices = @transform_1, window_bounds = array<i64: 28, 2>}, {pipeline_mode = #tpu.pipeline_mode<synchronous>, transform_indices = @transform_2, window_bounds = array<i64: 28, 2>}, {pipeline_mode = #tpu.pipeline_mode<synchronous>, transform_indices = @transform_3, window_bounds = array<i64: 32, 28>}, {pipeline_mode = #tpu.pipeline_mode<synchronous>, transform_indices = @transform_4, window_bounds = array<i64: 32, 1>}, {pipeline_mode = #tpu.pipeline_mode<synchronous>, transform_indices = @transform_5, window_bounds = array<i64: 16, 32>}, {pipeline_mode = #tpu.pipeline_mode<synchronous>, transform_indices = @transform_6, window_bounds = array<i64: 16, 1>}, {pipeline_mode = #tpu.pipeline_mode<synchronous>, transform_indices = @transform_7, window_bounds = array<i64: 28, 1>}, {pipeline_mode = #tpu.pipeline_mode<synchronous>, transform_indices = @transform_8, window_bounds = array<i64: 16, 1>}, {pipeline_mode = #tpu.pipeline_mode<synchronous>, transform_indices = @transform_9, window_bounds = array<i64: 1, 1>}, {transform_indices = @transform_10, window_bounds = array<i64: 1, 128>}]} {
    %c0 = arith.constant 0 : index
    %c0_0 = arith.constant 0 : index
    %0 = vector.load %arg1[%c0, %c0_0] : memref<28x128xf32, #tpu.memory_space<vmem>>, vector<28x128xf32>
    %c0_1 = arith.constant 0 : index
    %c0_2 = arith.constant 0 : index
    %1 = vector.load %arg2[%c0_1, %c0_2] : memref<28x2xf32, #tpu.memory_space<vmem>>, vector<28x1xf32>
    %c0_3 = arith.constant 0 : index
    %c0_4 = arith.constant 0 : index
    %2 = vector.load %arg3[%c0_3, %c0_4] : memref<28x2xf32, #tpu.memory_space<vmem>>, vector<28x1xf32>
    %3 = vector.broadcast %1 : vector<28x1xf32> to vector<28x128xf32>
    %4 = arith.mulf %0, %3 : vector<28x128xf32>
    %cst = arith.constant dense<0.000000e+00> : vector<128xf32>
    %5 = vector.multi_reduction <add>, %4, %cst [0] : vector<28x128xf32> to vector<128xf32>
    %6 = vector.shape_cast %5 : vector<128xf32> to vector<1x128xf32>
    %7 = vector.broadcast %6 : vector<1x128xf32> to vector<28x128xf32>
    %8 = arith.mulf %0, %7 : vector<28x128xf32>
    %9 = vector.broadcast %2 : vector<28x1xf32> to vector<28x128xf32>
    %10 = arith.addf %8, %9 : vector<28x128xf32>
    %11 = arith.addf %10, %0 : vector<28x128xf32>
    %c0_5 = arith.constant 0 : index
    %c1 = arith.constant 1 : index
    %12 = vector.load %arg2[%c0_5, %c1] : memref<28x2xf32, #tpu.memory_space<vmem>>, vector<28x1xf32>
    %c0_6 = arith.constant 0 : index
    %c1_7 = arith.constant 1 : index
    %13 = vector.load %arg3[%c0_6, %c1_7] : memref<28x2xf32, #tpu.memory_space<vmem>>, vector<28x1xf32>
    %14 = vector.broadcast %12 : vector<28x1xf32> to vector<28x128xf32>
    %15 = arith.mulf %11, %14 : vector<28x128xf32>
    %cst_8 = arith.constant dense<0.000000e+00> : vector<128xf32>
    %16 = vector.multi_reduction <add>, %15, %cst_8 [0] : vector<28x128xf32> to vector<128xf32>
    %17 = vector.shape_cast %16 : vector<128xf32> to vector<1x128xf32>
    %18 = vector.broadcast %17 : vector<1x128xf32> to vector<28x128xf32>
    %19 = arith.mulf %0, %18 : vector<28x128xf32>
    %20 = vector.broadcast %13 : vector<28x1xf32> to vector<28x128xf32>
    %21 = arith.addf %19, %20 : vector<28x128xf32>
    %22 = arith.addf %21, %11 : vector<28x128xf32>
    %c0_9 = arith.constant 0 : index
    %c0_10 = arith.constant 0 : index
    %23 = vector.load %arg4[%c0_9, %c0_10] : memref<32x28xf32, #tpu.memory_space<vmem>>, vector<32x28xf32>
    %cst_11 = arith.constant dense<0.000000e+00> : vector<32x128xf32>
    %24 = tpu.matmul %23, %0, %cst_11 {dimension_numbers = #tpu.dot_dimension_numbers<[1], [0], [0], [1], [0, 0, 1, 1], [], []>} : vector<32x28xf32>, vector<28x128xf32>, vector<32x128xf32> -> vector<32x128xf32>
    %c0_12 = arith.constant 0 : index
    %c0_13 = arith.constant 0 : index
    %25 = vector.load %arg5[%c0_12, %c0_13] : memref<32x1xf32, #tpu.memory_space<vmem>>, vector<32x1xf32>
    %26 = vector.broadcast %25 : vector<32x1xf32> to vector<32x128xf32>
    %27 = arith.addf %24, %26 : vector<32x128xf32>
    %cst_14 = arith.constant 0.000000e+00 : f32
    %28 = vector.broadcast %cst_14 : f32 to vector<32x128xf32>
    %29 = arith.maximumf %27, %28 : vector<32x128xf32>
    %c0_15 = arith.constant 0 : index
    %c0_16 = arith.constant 0 : index
    %30 = vector.load %arg6[%c0_15, %c0_16] : memref<16x32xf32, #tpu.memory_space<vmem>>, vector<16x32xf32>
    %cst_17 = arith.constant dense<0.000000e+00> : vector<16x128xf32>
    %31 = tpu.matmul %30, %29, %cst_17 {dimension_numbers = #tpu.dot_dimension_numbers<[1], [0], [0], [1], [0, 0, 1, 1], [], []>} : vector<16x32xf32>, vector<32x128xf32>, vector<16x128xf32> -> vector<16x128xf32>
    %c0_18 = arith.constant 0 : index
    %c0_19 = arith.constant 0 : index
    %32 = vector.load %arg7[%c0_18, %c0_19] : memref<16x1xf32, #tpu.memory_space<vmem>>, vector<16x1xf32>
    %33 = vector.broadcast %32 : vector<16x1xf32> to vector<16x128xf32>
    %34 = arith.addf %31, %33 : vector<16x128xf32>
    %cst_20 = arith.constant 0.000000e+00 : f32
    %35 = vector.broadcast %cst_20 : f32 to vector<16x128xf32>
    %36 = arith.maximumf %34, %35 : vector<16x128xf32>
    %c0_21 = arith.constant 0 : index
    %c0_22 = arith.constant 0 : index
    %37 = vector.load %arg8[%c0_21, %c0_22] : memref<28x1xf32, #tpu.memory_space<vmem>>, vector<28x1xf32>
    %38 = vector.broadcast %37 : vector<28x1xf32> to vector<28x128xf32>
    %39 = arith.mulf %22, %38 : vector<28x128xf32>
    %cst_23 = arith.constant dense<0.000000e+00> : vector<128xf32>
    %40 = vector.multi_reduction <add>, %39, %cst_23 [0] : vector<28x128xf32> to vector<128xf32>
    %41 = vector.shape_cast %40 : vector<128xf32> to vector<1x128xf32>
    %c0_24 = arith.constant 0 : index
    %c0_25 = arith.constant 0 : index
    %42 = vector.load %arg9[%c0_24, %c0_25] : memref<16x1xf32, #tpu.memory_space<vmem>>, vector<16x1xf32>
    %43 = vector.broadcast %42 : vector<16x1xf32> to vector<16x128xf32>
    %44 = arith.mulf %36, %43 : vector<16x128xf32>
    %cst_26 = arith.constant dense<0.000000e+00> : vector<128xf32>
    %45 = vector.multi_reduction <add>, %44, %cst_26 [0] : vector<16x128xf32> to vector<128xf32>
    %46 = vector.shape_cast %45 : vector<128xf32> to vector<1x128xf32>
    %47 = arith.addf %41, %46 : vector<1x128xf32>
    %c0_27 = arith.constant 0 : index
    %c0_28 = arith.constant 0 : index
    %48 = vector.load %arg10[%c0_27, %c0_28] : memref<1x1xf32, #tpu.memory_space<vmem>>, vector<1x1xf32>
    %49 = vector.broadcast %48 : vector<1x1xf32> to vector<1x128xf32>
    %50 = arith.addf %47, %49 : vector<1x128xf32>
    %51 = arith.negf %50 : vector<1x128xf32>
    %52 = math.exp %51 : vector<1x128xf32>
    %cst_29 = arith.constant 1.000000e+00 : f32
    %53 = vector.broadcast %cst_29 : f32 to vector<1x128xf32>
    %54 = arith.addf %53, %52 : vector<1x128xf32>
    %55 = arith.divf %53, %54 : vector<1x128xf32>
    %c0_30 = arith.constant 0 : index
    %c0_31 = arith.constant 0 : index
    %56 = vector.load %arg11[%c0_30, %c0_31] : memref<1x128xf32, #tpu.memory_space<vmem>>, vector<1x128xf32>
    tpu.vector_store %arg11[%c0_30, %c0_31], %55 {strides = array<i32>} : memref<1x128xf32, #tpu.memory_space<vmem>>, vector<1x128xf32>,
    return
  }
  func.func @transform_0(%arg0: i32) -> (i32, i32) {
    %c0_i32 = arith.constant 0 : i32
    %c0_i32_0 = arith.constant 0 : i32
    return %c0_i32, %arg0 : i32, i32
  }
  func.func @transform_1(%arg0: i32) -> (i32, i32) {
    %c0_i32 = arith.constant 0 : i32
    %c0_i32_0 = arith.constant 0 : i32
    %c0_i32_1 = arith.constant 0 : i32
    return %c0_i32, %c0_i32_0 : i32, i32
  }
  func.func @transform_2(%arg0: i32) -> (i32, i32) {
    %c0_i32 = arith.constant 0 : i32
    %c0_i32_0 = arith.constant 0 : i32
    %c0_i32_1 = arith.constant 0 : i32
    return %c0_i32, %c0_i32_0 : i32, i32
  }
  func.func @transform_3(%arg0: i32) -> (i32, i32) {
    %c0_i32 = arith.constant 0 : i32
    %c0_i32_0 = arith.constant 0 : i32
    %c0_i32_1 = arith.constant 0 : i32
    return %c0_i32, %c0_i32_0 : i32, i32
  }
  func.func @transform_4(%arg0: i32) -> (i32, i32) {
    %c0_i32 = arith.constant 0 : i32
    %c0_i32_0 = arith.constant 0 : i32
    %c0_i32_1 = arith.constant 0 : i32
    return %c0_i32, %c0_i32_0 : i32, i32
  }
  func.func @transform_5(%arg0: i32) -> (i32, i32) {
    %c0_i32 = arith.constant 0 : i32
    %c0_i32_0 = arith.constant 0 : i32
    %c0_i32_1 = arith.constant 0 : i32
    return %c0_i32, %c0_i32_0 : i32, i32
  }
  func.func @transform_6(%arg0: i32) -> (i32, i32) {
    %c0_i32 = arith.constant 0 : i32
    %c0_i32_0 = arith.constant 0 : i32
    %c0_i32_1 = arith.constant 0 : i32
    return %c0_i32, %c0_i32_0 : i32, i32
  }
  func.func @transform_7(%arg0: i32) -> (i32, i32) {
    %c0_i32 = arith.constant 0 : i32
    %c0_i32_0 = arith.constant 0 : i32
    %c0_i32_1 = arith.constant 0 : i32
    return %c0_i32, %c0_i32_0 : i32, i32
  }
  func.func @transform_8(%arg0: i32) -> (i32, i32) {
    %c0_i32 = arith.constant 0 : i32
    %c0_i32_0 = arith.constant 0 : i32
    %c0_i32_1 = arith.constant 0 : i32
    return %c0_i32, %c0_i32_0 : i32, i32
  }
  func.func @transform_9(%arg0: i32) -> (i32, i32) {
    %c0_i32 = arith.constant 0 : i32
    %c0_i32_0 = arith.constant 0 : i32
    %c0_i32_1 = arith.constant 0 : i32
    return %c0_i32, %c0_i32_0 : i32, i32
  }
  func.func @transform_10(%arg0: i32) -> (i32, i32) {
    %c0_i32 = arith.constant 0 : i32
    %c0_i32_0 = arith.constant 0 : i32
    return %c0_i32, %arg0 : i32, i32
  }
}

</mosaic_0001>

<llo_original>
// kernel: tpu_custom_call.1
$region0: #{tpu_custom_call.1}
  #allocation0 [shape = 'u32[]', space=smem, size = 0x4, offset = 0x4, fixed_abs, tag = 'smem constant byte address 0x4 - core index']
  #allocation1 [shape = 'u32[144,128]{1,0:T(1,128)}', space=vmem, size = 0x12000, scoped, tag = 'internal scratch']
  #allocation2 [shape = 'f32[1,1]{1,0:T(1,128)S(1)}', space=vmem, size = 0x200, scoped, tag = 'scoped memory for tpu_custom_call.1']
  %s0 = inlined_call_operand.vmem [shape: f32[28,128], index: 0, kind: input, shape index: {}]
  %s1 = inlined_call_operand.vmem [shape: f32[28,2], index: 1, kind: input, shape index: {}]
  %s2 = inlined_call_operand.vmem [shape: f32[28,2], index: 2, kind: input, shape index: {}]
  %s3 = inlined_call_operand.vmem [shape: f32[32,28], index: 3, kind: input, shape index: {}]
  %s4 = inlined_call_operand.vmem [shape: f32[32,1], index: 4, kind: input, shape index: {}]
  %s5 = inlined_call_operand.vmem [shape: f32[16,32], index: 5, kind: input, shape index: {}]
  %s6 = inlined_call_operand.vmem [shape: f32[16,1], index: 6, kind: input, shape index: {}]
  %s7 = inlined_call_operand.vmem [shape: f32[28,1], index: 7, kind: input, shape index: {}]
  %s8 = inlined_call_operand.vmem [shape: f32[16,1], index: 8, kind: input, shape index: {}]
  %s9 = inlined_call_operand.<no memory space> [shape: f32[1,1], index: 9, kind: input, shape index: {}]
  %s10 = inlined_call_operand.hbm [shape: f32[1,128], index: 10, kind: output, shape index: {}]
  %s11 = sld [smem:[#allocation0]]
  $region50: #{tpu_custom_call.1} parent=0
    _
  %s13 = ssub.s32 1, %s11
  %s14 = scalar_select 0, %s13, %s11
  %v15 = vstv %s9
  %16 = vst [vmem:[#allocation2] sm:$0x1] %v15
  $region1: #{tpu_custom_call.1} parent=0
    #allocation3 [shape = 'u8[512]{0}', space=vmem, size = 0x400, scoped, tag = 'output window, operand 0, single buffered']
    #allocation4 [shape = 's32[1]{0}', space=sflag, size = 0x4, scoped, tag = 'scoped memory for tpu_custom_call.1']
    %17 = vsyncpa [#allocation4], 0
    // Predicated region
    $region2: #{tpu_custom_call.1} parent=1 // pred_check
      _
    $region3: #{tpu_custom_call.1} parent=1 // pred_check_branch
      %19 = sbr.rel (0) target = $region5
    $region4: #{tpu_custom_call.1} parent=1 // pred_region
      _
    $region5: #{tpu_custom_call.1} parent=1 // pred_fallthru
      _
    // Predicated region
    $region6: #{tpu_custom_call.1} parent=1 // pred_check
      _
    $region7: #{tpu_custom_call.1} parent=1 // pred_check_branch
      %21 = sbr.rel (0) target = $region9
    $region8: #{tpu_custom_call.1} parent=1 // pred_region
      _
    $region9: #{tpu_custom_call.1} parent=1 // pred_fallthru
      _
    // Predicated region
    $region10: #{tpu_custom_call.1} parent=1 // pred_check
      _
    $region11: #{tpu_custom_call.1} parent=1 // pred_check_branch
      %23 = sbr.rel (0) target = $region13
    $region12: #{tpu_custom_call.1} parent=1 // pred_region
      _
    $region13: #{tpu_custom_call.1} parent=1 // pred_fallthru
      _
    // Predicated region
    $region14: #{tpu_custom_call.1} parent=1 // pred_check
      _
    $region15: #{tpu_custom_call.1} parent=1 // pred_check_branch
      %25 = sbr.rel (0) target = $region17
    $region16: #{tpu_custom_call.1} parent=1 // pred_region
      _
    $region17: #{tpu_custom_call.1} parent=1 // pred_fallthru
      _
    // Predicated region
    $region18: #{tpu_custom_call.1} parent=1 // pred_check
      _
    $region19: #{tpu_custom_call.1} parent=1 // pred_check_branch
      %27 = sbr.rel (0) target = $region21
    $region20: #{tpu_custom_call.1} parent=1 // pred_region
      _
    $region21: #{tpu_custom_call.1} parent=1 // pred_fallthru
      _
    // Predicated region
    $region22: #{tpu_custom_call.1} parent=1 // pred_check
      _
    $region23: #{tpu_custom_call.1} parent=1 // pred_check_branch
      %29 = sbr.rel (0) target = $region25
    $region24: #{tpu_custom_call.1} parent=1 // pred_region
      _
    $region25: #{tpu_custom_call.1} parent=1 // pred_fallthru
      _
    // Predicated region
    $region26: #{tpu_custom_call.1} parent=1 // pred_check
      _
    $region27: #{tpu_custom_call.1} parent=1 // pred_check_branch
      %31 = sbr.rel (0) target = $region29
    $region28: #{tpu_custom_call.1} parent=1 // pred_region
      _
    $region29: #{tpu_custom_call.1} parent=1 // pred_fallthru
      _
    // Predicated region
    $region30: #{tpu_custom_call.1} parent=1 // pred_check
      _
    $region31: #{tpu_custom_call.1} parent=1 // pred_check_branch
      %33 = sbr.rel (0) target = $region33
    $region32: #{tpu_custom_call.1} parent=1 // pred_region
      _
    $region33: #{tpu_custom_call.1} parent=1 // pred_fallthru
      _
    // Predicated region
    $region34: #{tpu_custom_call.1} parent=1 // pred_check
      _
    $region35: #{tpu_custom_call.1} parent=1 // pred_check_branch
      %35 = sbr.rel (0) target = $region37
    $region36: #{tpu_custom_call.1} parent=1 // pred_region
      _
    $region37: #{tpu_custom_call.1} parent=1 // pred_fallthru
      _
    // Predicated region
    $region38: #{tpu_custom_call.1} parent=1 // pred_check
      _
    $region39: #{tpu_custom_call.1} parent=1 // pred_check_branch
      %37 = sbr.rel (0) target = $region41
    $region40: #{tpu_custom_call.1} parent=1 // pred_region
      _
    $region41: #{tpu_custom_call.1} parent=1 // pred_fallthru
      _
    %v38 = vld [vmem:[%s0] sm:$0xff]
    %v39 = vld [vmem:[%s0 + $0x8] sm:$0xff]
    %v40 = vld [vmem:[%s0 + $0x10] sm:$0xff]
    %v41 = vld [vmem:[%s0 + $0x18] sm:$0xf]
    %v42 = vld [vmem:[%s1] sm:$0xff]
    %v43 = vld [vmem:[%s1 + $0x8] sm:$0xff]
    %v44 = vld [vmem:[%s1 + $0x10] sm:$0xff]
    %v45 = vld [vmem:[%s1 + $0x18] sm:$0xf]
    %v46 = vld [vmem:[%s2] sm:$0xff]
    %v47 = vld [vmem:[%s2 + $0x8] sm:$0xff]
    %v48 = vld [vmem:[%s2 + $0x10] sm:$0xff]
    %v49 = vld [vmem:[%s2 + $0x18] sm:$0xf]
    %51 = vset.pattern.permute.xlu0 0
    %52 = vperm.xlu0 %51, %v42
    %v53 = vpop.permute.xlu0 %52
    %56 = vset.pattern.permute.xlu0 0
    %57 = vperm.xlu0 %56, %v43
    %v58 = vpop.permute.xlu0 %57
    %61 = vset.pattern.permute.xlu0 0
    %62 = vperm.xlu0 %61, %v44
    %v63 = vpop.permute.xlu0 %62
    %66 = vset.pattern.permute.xlu0 0
    %67 = vperm.xlu0 %66, %v45
    %v68 = vpop.permute.xlu0 %67
    %v70 = vmul.f32 %v38, %v53
    %v71 = vmul.f32 %v39, %v58
    %v72 = vmul.f32 %v40, %v63
    %v73 = vmul.f32 %v41, %v68
    %v74 = vadd.f32 %v70, %v71
    %v75 = vadd.f32 %v74, %v72
    %vm76 = vcmask 1043456
    %v77 = vsel %vm76, %v73, 0.0
    %v78 = vadd.f32 %v75, %v77
    %v79 = vrot.slane %v78, 4
    %v80 = vadd.f32 %v78, %v79
    %v81 = vrot.slane %v80, 2
    %v82 = vadd.f32 %v80, %v81
    %v83 = vrot.slane %v82, 1
    %v84 = vadd.f32 %v82, %v83
    %v85 = vmul.f32 %v38, %v84
    %v86 = vmul.f32 %v39, %v84
    %v87 = vmul.f32 %v40, %v84
    %v88 = vmul.f32 %v41, %v84
    %90 = vset.pattern.permute.xlu0 0
    %91 = vperm.xlu0 %90, %v46
    %v92 = vpop.permute.xlu0 %91
    %95 = vset.pattern.permute.xlu0 0
    %96 = vperm.xlu0 %95, %v47
    %v97 = vpop.permute.xlu0 %96
    %100 = vset.pattern.permute.xlu0 0
    %101 = vperm.xlu0 %100, %v48
    %v102 = vpop.permute.xlu0 %101
    %105 = vset.pattern.permute.xlu0 0
    %106 = vperm.xlu0 %105, %v49
    %v107 = vpop.permute.xlu0 %106
    %v109 = vadd.f32 %v85, %v92
    %v110 = vadd.f32 %v86, %v97
    %v111 = vadd.f32 %v87, %v102
    %v112 = vadd.f32 %v88, %v107
    %v113 = vadd.f32 %v109, %v38
    %v114 = vadd.f32 %v110, %v39
    %v115 = vadd.f32 %v111, %v40
    %v116 = vadd.f32 %v112, %v41
    %117 = vset.pattern.permute.xlu0 1
    %118 = vperm.xlu0 %117, %v42
    %v119 = vpop.permute.xlu0 %118
    %121 = vset.pattern.permute.xlu0 1
    %122 = vperm.xlu0 %121, %v43
    %v123 = vpop.permute.xlu0 %122
    %125 = vset.pattern.permute.xlu0 1
    %126 = vperm.xlu0 %125, %v44
    %v127 = vpop.permute.xlu0 %126
    %129 = vset.pattern.permute.xlu0 1
    %130 = vperm.xlu0 %129, %v45
    %v131 = vpop.permute.xlu0 %130
    %v133 = vmul.f32 %v113, %v119
    %v134 = vmul.f32 %v114, %v123
    %v135 = vmul.f32 %v115, %v127
    %v136 = vmul.f32 %v116, %v131
    %v137 = vadd.f32 %v133, %v134
    %v138 = vadd.f32 %v137, %v135
    %v139 = vsel %vm76, %v136, 0.0
    %v140 = vadd.f32 %v138, %v139
    %v141 = vrot.slane %v140, 4
    %v142 = vadd.f32 %v140, %v141
    %v143 = vrot.slane %v142, 2
    %v144 = vadd.f32 %v142, %v143
    %v145 = vrot.slane %v144, 1
    %v146 = vadd.f32 %v144, %v145
    %v147 = vmul.f32 %v38, %v146
    %v148 = vmul.f32 %v39, %v146
    %v149 = vmul.f32 %v40, %v146
    %v150 = vmul.f32 %v41, %v146
    %151 = vset.pattern.permute.xlu0 1
    %152 = vperm.xlu0 %151, %v46
    %v153 = vpop.permute.xlu0 %152
    %155 = vset.pattern.permute.xlu0 1
    %156 = vperm.xlu0 %155, %v47
    %v157 = vpop.permute.xlu0 %156
    %159 = vset.pattern.permute.xlu0 1
    %160 = vperm.xlu0 %159, %v48
    %v161 = vpop.permute.xlu0 %160
    %163 = vset.pattern.permute.xlu0 1
    %164 = vperm.xlu0 %163, %v49
    %v165 = vpop.permute.xlu0 %164
    %v167 = vadd.f32 %v147, %v153
    %v168 = vadd.f32 %v148, %v157
    %v169 = vadd.f32 %v149, %v161
    %v170 = vadd.f32 %v150, %v165
    %v171 = vadd.f32 %v167, %v113
    %v172 = vadd.f32 %v168, %v114
    %v173 = vadd.f32 %v169, %v115
    %v174 = vadd.f32 %v170, %v116
    %v175 = vld [vmem:[%s3] sm:$0xff]
    %v176 = vld [vmem:[%s3 + $0x8] sm:$0xff]
    %v177 = vld [vmem:[%s3 + $0x10] sm:$0xff]
    %v178 = vld [vmem:[%s3 + $0x18] sm:$0xff]
    %v179 = vld [vmem:[%s4] sm:$0xff]
    %v180 = vld [vmem:[%s4 + $0x8] sm:$0xff]
    %v181 = vld [vmem:[%s4 + $0x10] sm:$0xff]
    %v182 = vld [vmem:[%s4 + $0x18] sm:$0xff]
    %184 = vset.pattern.permute.xlu0 0
    %185 = vperm.xlu0 %184, %v179
    %v186 = vpop.permute.xlu0 %185
    %189 = vset.pattern.permute.xlu0 0
    %190 = vperm.xlu0 %189, %v180
    %v191 = vpop.permute.xlu0 %190
    %194 = vset.pattern.permute.xlu0 0
    %195 = vperm.xlu0 %194, %v181
    %v196 = vpop.permute.xlu0 %195
    %199 = vset.pattern.permute.xlu0 0
    %200 = vperm.xlu0 %199, %v182
    %v201 = vpop.permute.xlu0 %200
    %vm203 = vcmask 228352
    %v205 = vsel %vm203, %v175, 0
    %v208 = vsel %vm203, %v176, 0
    %v211 = vsel %vm203, %v177, 0
    %v214 = vsel %vm203, %v178, 0
    %v217 = vsel %vm76, %v41, 0
    %219 = vmatprep.subr.mxu0 0.0
    %220 = vmatpush1.msra.mxu0 %v38
    %221 = vmatprep.subr.mxu0 0.0
    %222 = vmatpush1.msra.mxu0 %v39
    %223 = vmatprep.subr.mxu0 0.0
    %224 = vmatpush1.msra.mxu0 %v40
    %225 = vmatprep.subr.mxu0 0.0
    %226 = vmatpush1.msra.mxu0 %v217
    %227 = vmatprep.subr.mxu0 0.0
    %228 = vmatpush1.msra.mxu0 0.0
    %229 = vmatprep.subr.mxu0 0.0
    %230 = vmatpush1.msra.mxu0 0.0
    %231 = vmatprep.subr.mxu0 0.0
    %232 = vmatpush1.msra.mxu0 0.0
    %233 = vmatprep.subr.mxu0 0.0
    %234 = vmatpush1.msra.mxu0 0.0
    %235 = vmatprep.subr.mxu0 0.0
    %236 = vmatpush1.msra.mxu0 0.0
    %237 = vmatprep.subr.mxu0 0.0
    %238 = vmatpush1.msra.mxu0 0.0
    %239 = vmatprep.subr.mxu0 0.0
    %240 = vmatpush1.msra.mxu0 0.0
    %241 = vmatprep.subr.mxu0 0.0
    %242 = vmatpush1.msra.mxu0 0.0
    %243 = vmatprep.subr.mxu0 0.0
    %244 = vmatpush1.msra.mxu0 0.0
    %245 = vmatprep.subr.mxu0 0.0
    %246 = vmatpush1.msra.mxu0 0.0
    %247 = vmatprep.subr.mxu0 0.0
    %248 = vmatpush1.msra.mxu0 0.0
    %249 = vmatprep.subr.mxu0 0.0
    %250 = vmatpush1.msra.mxu0 0.0
    %251 = vmatprep.subr.mxu0 0.0
    %252 = vmatpush1.msra.mxu0 0.0
    %253 = vmatprep.subr.mxu0 0.0
    %254 = vmatpush1.msra.mxu0 0.0
    %255 = vmatprep.subr.mxu0 0.0
    %256 = vmatpush1.msra.mxu0 0.0
    %257 = vmatprep.subr.mxu0 0.0
    %258 = vmatpush1.msra.mxu0 0.0
    %259 = vmatprep.subr.mxu0 0.0
    %260 = vmatpush1.msra.mxu0 0.0
    %261 = vmatprep.subr.mxu0 0.0
    %262 = vmatpush1.msra.mxu0 0.0
    %263 = vmatprep.subr.mxu0 0.0
    %264 = vmatpush1.msra.mxu0 0.0
    %265 = vmatprep.subr.mxu0 0.0
    %266 = vmatpush1.msra.mxu0 0.0
    %267 = vmatprep.subr.mxu0 0.0
    %268 = vmatpush1.msra.mxu0 0.0
    %269 = vmatprep.subr.mxu0 0.0
    %270 = vmatpush1.msra.mxu0 0.0
    %271 = vmatprep.subr.mxu0 0.0
    %272 = vmatpush1.msra.mxu0 0.0
    %273 = vmatprep.subr.mxu0 0.0
    %274 = vmatpush1.msra.mxu0 0.0
    %275 = vmatprep.subr.mxu0 0.0
    %276 = vmatpush1.msra.mxu0 0.0
    %277 = vmatprep.subr.mxu0 0.0
    %278 = vmatpush1.msra.mxu0 0.0
    %279 = vmatprep.subr.mxu0 0.0
    %280 = vmatpush1.msra.mxu0 0.0
    %281 = vmatprep.subr.mxu0 0.0
    %282 = vmatpush1.msra.mxu0 0.0
    %283 = vmatprep.mubr.f32.mxu0 0.0
    %284 = vmatmul.mubr.f32.gmra.mrb[0].mxu0 %v205
    %v285 = vpop.f32.mrb[0].mxu0
    %v286 = vadd.f32 %v186, %v285
    %v287 = vpop.f32.mrb[0].mxu0
    %288 = vmatprep.mubr.f32.mxu0 0.0
    %289 = vmatmul.mubr.f32.gmra.mrb[0].mxu0 %v208
    %v290 = vpop.f32.mrb[0].mxu0
    %v291 = vadd.f32 %v191, %v290
    %v292 = vpop.f32.mrb[0].mxu0
    %293 = vmatprep.mubr.f32.mxu0 0.0
    %294 = vmatmul.mubr.f32.gmra.mrb[0].mxu0 %v211
    %v295 = vpop.f32.mrb[0].mxu0
    %v296 = vadd.f32 %v196, %v295
    %v297 = vpop.f32.mrb[0].mxu0
    %298 = vmatprep.mubr.f32.mxu0 0.0
    %299 = vmatmul.mubr.f32.gmra.mrb[0].mxu0 %v214
    %v300 = vpop.f32.mrb[0].mxu0
    %v301 = vadd.f32 %v201, %v300
    %v302 = vpop.f32.mrb[0].mxu0
    %303 = vdwg.mxu0
    %v304 = vmax.f32 %v286, 0.0
    %v305 = vmax.f32 %v291, 0.0
    %v306 = vmax.f32 %v296, 0.0
    %v307 = vmax.f32 %v301, 0.0
    %v308 = vld [vmem:[%s5] sm:$0xff]
    %v309 = vld [vmem:[%s5 + $0x8] sm:$0xff]
    %v310 = vld [vmem:[%s6] sm:$0xff]
    %v311 = vld [vmem:[%s6 + $0x8] sm:$0xff]
    %313 = vset.pattern.permute.xlu0 0
    %314 = vperm.xlu0 %313, %v310
    %v315 = vpop.permute.xlu0 %314
    %318 = vset.pattern.permute.xlu0 0
    %319 = vperm.xlu0 %318, %v311
    %v320 = vpop.permute.xlu0 %319
    %vm322 = vcmask 261120
    %v324 = vsel %vm322, %v308, 0
    %v327 = vsel %vm322, %v309, 0
    %329 = vmatprep.subr.mxu0 0.0
    %330 = vmatpush1.msra.mxu0 %v304
    %331 = vmatprep.subr.mxu0 0.0
    %332 = vmatpush1.msra.mxu0 %v305
    %333 = vmatprep.subr.mxu0 0.0
    %334 = vmatpush1.msra.mxu0 %v306
    %335 = vmatprep.subr.mxu0 0.0
    %336 = vmatpush1.msra.mxu0 %v307
    %337 = vmatprep.subr.mxu0 0.0
    %338 = vmatpush1.msra.mxu0 0.0
    %339 = vmatprep.subr.mxu0 0.0
    %340 = vmatpush1.msra.mxu0 0.0
    %341 = vmatprep.subr.mxu0 0.0
    %342 = vmatpush1.msra.mxu0 0.0
    %343 = vmatprep.subr.mxu0 0.0
    %344 = vmatpush1.msra.mxu0 0.0
    %345 = vmatprep.subr.mxu0 0.0
    %346 = vmatpush1.msra.mxu0 0.0
    %347 = vmatprep.subr.mxu0 0.0
    %348 = vmatpush1.msra.mxu0 0.0
    %349 = vmatprep.subr.mxu0 0.0
    %350 = vmatpush1.msra.mxu0 0.0
    %351 = vmatprep.subr.mxu0 0.0
    %352 = vmatpush1.msra.mxu0 0.0
    %353 = vmatprep.subr.mxu0 0.0
    %354 = vmatpush1.msra.mxu0 0.0
    %355 = vmatprep.subr.mxu0 0.0
    %356 = vmatpush1.msra.mxu0 0.0
    %357 = vmatprep.subr.mxu0 0.0
    %358 = vmatpush1.msra.mxu0 0.0
    %359 = vmatprep.subr.mxu0 0.0
    %360 = vmatpush1.msra.mxu0 0.0
    %361 = vmatprep.subr.mxu0 0.0
    %362 = vmatpush1.msra.mxu0 0.0
    %363 = vmatprep.subr.mxu0 0.0
    %364 = vmatpush1.msra.mxu0 0.0
    %365 = vmatprep.subr.mxu0 0.0
    %366 = vmatpush1.msra.mxu0 0.0
    %367 = vmatprep.subr.mxu0 0.0
    %368 = vmatpush1.msra.mxu0 0.0
    %369 = vmatprep.subr.mxu0 0.0
    %370 = vmatpush1.msra.mxu0 0.0
    %371 = vmatprep.subr.mxu0 0.0
    %372 = vmatpush1.msra.mxu0 0.0
    %373 = vmatprep.subr.mxu0 0.0
    %374 = vmatpush1.msra.mxu0 0.0
    %375 = vmatprep.subr.mxu0 0.0
    %376 = vmatpush1.msra.mxu0 0.0
    %377 = vmatprep.subr.mxu0 0.0
    %378 = vmatpush1.msra.mxu0 0.0
    %379 = vmatprep.subr.mxu0 0.0
    %380 = vmatpush1.msra.mxu0 0.0
    %381 = vmatprep.subr.mxu0 0.0
    %382 = vmatpush1.msra.mxu0 0.0
    %383 = vmatprep.subr.mxu0 0.0
    %384 = vmatpush1.msra.mxu0 0.0
    %385 = vmatprep.subr.mxu0 0.0
    %386 = vmatpush1.msra.mxu0 0.0
    %387 = vmatprep.subr.mxu0 0.0
    %388 = vmatpush1.msra.mxu0 0.0
    %389 = vmatprep.subr.mxu0 0.0
    %390 = vmatpush1.msra.mxu0 0.0
    %391 = vmatprep.subr.mxu0 0.0
    %392 = vmatpush1.msra.mxu0 0.0
    %393 = vmatprep.mubr.f32.mxu0 0.0
    %394 = vmatmul.mubr.f32.gmra.mrb[0].mxu0 %v324
    %v395 = vpop.f32.mrb[0].mxu0
    %v396 = vadd.f32 %v315, %v395
    %v397 = vpop.f32.mrb[0].mxu0
    %398 = vmatprep.mubr.f32.mxu0 0.0
    %399 = vmatmul.mubr.f32.gmra.mrb[0].mxu0 %v327
    %v400 = vpop.f32.mrb[0].mxu0
    %v401 = vadd.f32 %v320, %v400
    %v402 = vpop.f32.mrb[0].mxu0
    %403 = vdwg.mxu0
    %v404 = vmax.f32 %v396, 0.0
    %v405 = vmax.f32 %v401, 0.0
    %v406 = vld [vmem:[%s7] sm:$0xff]
    %v407 = vld [vmem:[%s7 + $0x8] sm:$0xff]
    %v408 = vld [vmem:[%s7 + $0x10] sm:$0xff]
    %v409 = vld [vmem:[%s7 + $0x18] sm:$0xf]
    %411 = vset.pattern.permute.xlu0 0
    %412 = vperm.xlu0 %411, %v406
    %v413 = vpop.permute.xlu0 %412
    %416 = vset.pattern.permute.xlu0 0
    %417 = vperm.xlu0 %416, %v407
    %v418 = vpop.permute.xlu0 %417
    %421 = vset.pattern.permute.xlu0 0
    %422 = vperm.xlu0 %421, %v408
    %v423 = vpop.permute.xlu0 %422
    %426 = vset.pattern.permute.xlu0 0
    %427 = vperm.xlu0 %426, %v409
    %v428 = vpop.permute.xlu0 %427
    %v430 = vmul.f32 %v171, %v413
    %v431 = vmul.f32 %v172, %v418
    %v432 = vmul.f32 %v173, %v423
    %v433 = vmul.f32 %v174, %v428
    %v434 = vadd.f32 %v430, %v431
    %v435 = vadd.f32 %v434, %v432
    %v436 = vsel %vm76, %v433, 0.0
    %v437 = vadd.f32 %v435, %v436
    %v438 = vrot.slane %v437, 4
    %v439 = vadd.f32 %v437, %v438
    %v440 = vrot.slane %v439, 2
    %v441 = vadd.f32 %v439, %v440
    %v442 = vrot.slane %v441, 1
    %v443 = vadd.f32 %v441, %v442
    %v444 = vld [vmem:[%s8] sm:$0xff]
    %v445 = vld [vmem:[%s8 + $0x8] sm:$0xff]
    %447 = vset.pattern.permute.xlu0 0
    %448 = vperm.xlu0 %447, %v444
    %v449 = vpop.permute.xlu0 %448
    %452 = vset.pattern.permute.xlu0 0
    %453 = vperm.xlu0 %452, %v445
    %v454 = vpop.permute.xlu0 %453
    %v456 = vmul.f32 %v404, %v449
    %v457 = vmul.f32 %v405, %v454
    %v458 = vadd.f32 %v456, %v457
    %v459 = vrot.slane %v458, 4
    %v460 = vadd.f32 %v458, %v459
    %v461 = vrot.slane %v460, 2
    %v462 = vadd.f32 %v460, %v461
    %v463 = vrot.slane %v462, 1
    %v464 = vadd.f32 %v462, %v463
    %v465 = vadd.f32 %v443, %v464
    %v466 = vld [vmem:[#allocation2] sm:$0x1]
    %468 = vset.pattern.permute.xlu0 0
    %469 = vperm.xlu0 %468, %v466
    %v470 = vpop.permute.xlu0 %469
    %v472 = vlaneseq
    %v473 = vshrl.u32 %v472, 7
    %v474 = vsub.s32 0, %v473
    %v475 = vrot.slane %v470, %v474
    %v476 = vadd.f32 %v465, %v475
    %v477 = vxor.u32 %v476, 2147483648
    %v478 = vmul.f32 %v477, 1.442695
    %v479 = vpow.pop %v478
    %v480 = vadd.f32 %v479, 1.0
    %v481 = vrcp.pop %v480
    %v482 = vmul.f32 1.0, %v481
    %483 = vst [vmem:[#allocation3] sm:$0x1] %v482
    // Predicated region
    $region42: #{tpu_custom_call.1} parent=1 // pred_check
      _
    $region43: #{tpu_custom_call.1} parent=1 // pred_check_branch
      %485 = sbr.rel (0) target = $region45
    $region44: #{tpu_custom_call.1} parent=1 // pred_region
      %s487 = ssub.s32 16, 16
      %488 = vsyncadd [#allocation4], %s487
      %s490 = sshll.u32 [#allocation3], 4
      %s491 = int_to_ptr.vmem [resolvable:$true] %s490
      %493 = dma.vmem_to_hbm [thread:$0]  %s491, 16, %s10, [#allocation4]
    $region45: #{tpu_custom_call.1} parent=1 // pred_fallthru
      _
    // Predicated region
    $region46: #{tpu_custom_call.1} parent=1 // pred_check
      _
    $region47: #{tpu_custom_call.1} parent=1 // pred_check_branch
      %495 = sbr.rel (0) target = $region49
    $region48: #{tpu_custom_call.1} parent=1 // pred_region
      %496 = dma.done [#allocation4], 16
    $region49: #{tpu_custom_call.1} parent=1 // pred_fallthru
      _
    %497 = vsyncpa [#allocation4], 1

</llo_original>
